<compile_context>
chip_gen: v5e
topology: v5e:2x2
jax: 0.10.0
libtpu: 0.0.40
codegen_flags: <defaults>
</compile_context>

<pallas_src>
import math

import jax
import jax.numpy as jnp
from jax import lax
from jax.experimental import pallas as pl
from jax.experimental.pallas import tpu as pltpu


# Contract the fan-in axis of both operands: (emb_dim, K) x (TB, K) -> (emb_dim, TB).
_DN_FANIN = (((1,), (1,)), ((), ()))


def distmult_kernel(heads_ref, rels_ref, tails_ref,
                    w_ent_ref, b_ent_ref, w_rel_ref, b_rel_ref,
                    out_ref):
    w_ent = w_ent_ref[...]
    b_ent = b_ent_ref[...]

    # Lane-major (emb_dim, TB) embeddings straight off the MXU: no transposes
    # of the streamed tiles, no concat, f32 accumulation, shared W_ent.
    h = lax.dot_general(w_ent, heads_ref[...], _DN_FANIN,
                        preferred_element_type=jnp.float32) + b_ent
    t = lax.dot_general(w_ent, tails_ref[...], _DN_FANIN,
                        preferred_element_type=jnp.float32) + b_ent
    r = lax.dot_general(w_rel_ref[...], rels_ref[...], _DN_FANIN,
                        preferred_element_type=jnp.float32) + b_rel_ref[...]

    # DistMult trilinear product; reduce over emb_dim (sublane axis) yields a
    # lane-dense (1, TB) score row — unmasked full-lane stores.
    out_ref[...] = jnp.sum(h * r * t, axis=0, keepdims=True)


def _vmem_capacity_bytes():
    try:
        return int(pltpu.get_tpu_info().vmem_capacity_bytes)
    except Exception:
        return 64 << 20  # conservative fallback: v7x per-TensorCore VMEM


def _round_down(x, m):
    return max(m, (x // m) * m)


def _pick_batch_tile(B, num_ent, num_rel, emb_dim, stream_itemsize, vmem_cap):
    """Largest lane-aligned batch tile that fits VMEM, shrunk for small B so
    the grid keeps >= 4 steps (>= 2 per TensorCore on v7x)."""
    # Per-batch-lane VMEM cost: double-buffered streamed tiles + f32
    # temporaries (h/r/t/products, with slack) + double-buffered f32 output.
    per_lane = (2 * (2 * num_ent + num_rel) * stream_itemsize
                + 8 * emb_dim * 4
                + 2 * 4)
    weight_bytes = 2 * (emb_dim * (num_ent + num_rel) * stream_itemsize
                        + 2 * emb_dim * 4)
    budget = max(int(vmem_cap * 0.5) - weight_bytes - (4 << 20), 1 << 20)

    tb = min(1024, _round_down(budget // per_lane, 128))
    if tb >= 512:
        tb = _round_down(tb, 256)       # fill whole MXU column passes (v6e/v7x)
    # Small batches: prefer more (shorter) grid steps over one huge tile.
    if B <= 4 * tb:
        tb = _round_down(pl.cdiv(B, 4), 128)
    return max(128, tb)


def distmult_forward(heads, rels, tails, w_ent, b_ent, w_rel, b_rel,
                     *, stream_dtype=jnp.bfloat16, batch_tile=None):
    """heads/rels/tails: (B, num_ent)/(B, num_rel) dense inputs (PyTorch layout).
    w_ent: (emb_dim, num_ent), b_ent: (emb_dim,)  — nn.Linear layout.
    Returns scores of shape (B,), float32."""
    B, num_ent = heads.shape
    num_rel = rels.shape[1]
    emb_dim = w_ent.shape[0]

    itemsize = jnp.dtype(stream_dtype).itemsize
    vmem_cap = _vmem_capacity_bytes()
    TB = batch_tile if batch_tile is not None else _pick_batch_tile(
        B, num_ent, num_rel, emb_dim, itemsize, vmem_cap)
    num_tiles = pl.cdiv(B, TB)
    B_pad = num_tiles * TB

    def prep(x):
        # NOTE: for best end-to-end perf feed bf16 inputs (one-hot is exact in
        # bf16) or let this cast fuse with the producer under jit; no
        # transposes are done here.
        if x.dtype != stream_dtype:
            x = x.astype(stream_dtype)
        if B_pad != B:
            x = jnp.pad(x, ((0, B_pad - B), (0, 0)))
        return x

    heads_p, rels_p, tails_p = prep(heads), prep(rels), prep(tails)
    w_ent_s = w_ent.astype(stream_dtype)
    w_rel_s = w_rel.astype(stream_dtype)
    b_ent_c = b_ent.reshape(emb_dim, 1).astype(jnp.float32)
    b_rel_c = b_rel.reshape(emb_dim, 1).astype(jnp.float32)

    # VMEM budget from the actual tile footprint (+ headroom), capped by the
    # device capacity so a tile that fits v6e's 128 MiB cannot OOM v7x's 64 MiB.
    stream_bytes = 2 * (2 * num_ent + num_rel) * TB * itemsize     # double-buffered
    out_bytes = 2 * TB * 4
    weight_bytes = 2 * (emb_dim * (num_ent + num_rel) * itemsize + 2 * emb_dim * 4)
    temp_bytes = 8 * emb_dim * TB * 4                              # f32 temporaries
    vmem_limit = stream_bytes + out_bytes + weight_bytes + temp_bytes + (4 << 20)
    vmem_limit = int(min(max(vmem_limit, 32 << 20), vmem_cap))

    out = pl.pallas_call(
        distmult_kernel,
        out_shape=jax.ShapeDtypeStruct((1, B_pad), jnp.float32),
        grid_spec=pl.GridSpec(
            grid=(num_tiles,),
            in_specs=[
                pl.BlockSpec((TB, num_ent), lambda i: (i, 0)),        # heads tile
                pl.BlockSpec((TB, num_rel), lambda i: (i, 0)),        # rels  tile
                pl.BlockSpec((TB, num_ent), lambda i: (i, 0)),        # tails tile
                pl.BlockSpec((emb_dim, num_ent), lambda i: (0, 0)),   # W_ent (resident)
                pl.BlockSpec((emb_dim, 1), lambda i: (0, 0)),         # b_ent
                pl.BlockSpec((emb_dim, num_rel), lambda i: (0, 0)),   # W_rel (resident)
                pl.BlockSpec((emb_dim, 1), lambda i: (0, 0)),         # b_rel
            ],
            out_specs=pl.BlockSpec((1, TB), lambda i: (0, i)),        # lane-dense scores
        ),
        compiler_params=pltpu.CompilerParams(
            dimension_semantics=("parallel",),      # pipelined + v7x dual-TC sharding
            vmem_limit_bytes=vmem_limit),
    )(heads_p, rels_p, tails_p, w_ent_s, b_ent_c, w_rel_s, b_rel_c)

    return out[0, :B]


def l2_loss(w_ent, w_rel):
    # Plain JAX: a single scalar reduction over the weights — not worth a kernel.
    return (jnp.sum(w_ent.astype(jnp.float32) ** 2)
            + jnp.sum(w_rel.astype(jnp.float32) ** 2)) / 2.0


def init_params(key, num_ent, num_rel, emb_dim):
    """Mirrors the PyTorch init: xavier_normal_ weights (shape (emb_dim, fan_in)),
    nn.Linear default uniform bias."""
    k1, k2, k3, k4 = jax.random.split(key, 4)
    std_ent = math.sqrt(2.0 / (num_ent + emb_dim))
    std_rel = math.sqrt(2.0 / (num_rel + emb_dim))
    w_ent = std_ent * jax.random.normal(k1, (emb_dim, num_ent), jnp.float32)
    w_rel = std_rel * jax.random.normal(k2, (emb_dim, num_rel), jnp.float32)
    bound_ent = 1.0 / math.sqrt(num_ent)
    bound_rel = 1.0 / math.sqrt(num_rel)
    b_ent = jax.random.uniform(k3, (emb_dim,), jnp.float32, -bound_ent, bound_ent)
    b_rel = jax.random.uniform(k4, (emb_dim,), jnp.float32, -bound_rel, bound_rel)
    return w_ent, b_ent, w_rel, b_rel


if __name__ == "__main__":
    num_ent, num_rel, emb_dim, B = 64, 32, 32, 512   # -> 4 batch tiles of 128

    key = jax.random.PRNGKey(0)
    kp, kh, kr, kt = jax.random.split(key, 4)
    w_ent, b_ent, w_rel, b_rel = init_params(kp, num_ent, num_rel, emb_dim)

    # Typical DistMult usage: one-hot selectors fed as dense inputs to the
    # Linear layers. One-hot is exact in bf16, and feeding bf16 directly avoids
    # any wrapper-side cast pass over the big streamed tensors.
    h_idx = jax.random.randint(kh, (B,), 0, num_ent)
    r_idx = jax.random.randint(kr, (B,), 0, num_rel)
    t_idx = jax.random.randint(kt, (B,), 0, num_ent)
    heads = jax.nn.one_hot(h_idx, num_ent, dtype=jnp.bfloat16)
    rels = jax.nn.one_hot(r_idx, num_rel, dtype=jnp.bfloat16)
    tails = jax.nn.one_hot(t_idx, num_ent, dtype=jnp.bfloat16)

    score = distmult_forward(heads, rels, tails, w_ent, b_ent, w_rel, b_rel)
    score = jax.block_until_ready(score)

    # Pure-JAX reference (PyTorch forward) with the weights rounded to the
    # kernel's bf16 streaming dtype: one-hot inputs are exact in bf16, so the
    # only remaining difference vs. the kernel is f32 reduction order.
    wq_ent = w_ent.astype(jnp.bfloat16).astype(jnp.float32)
    wq_rel = w_rel.astype(jnp.bfloat16).astype(jnp.float32)
    hf = heads.astype(jnp.float32)
    rf = rels.astype(jnp.float32)
    tf = tails.astype(jnp.float32)
    h = hf @ wq_ent.T + b_ent
    r = rf @ wq_rel.T + b_rel
    t = tf @ wq_ent.T + b_ent
    ref = jnp.sum(h * r * t, axis=1)

    assert score.shape == (B,)
    assert jnp.allclose(score, ref, atol=1e-4, rtol=1e-4), \
        float(jnp.max(jnp.abs(score - ref)))

    print("KERNEL_OK")
</pallas_src>

<mosaic_0001>
module attributes {stable_mosaic.version = 11 : i64} {
  func.func @distmult_kernel(%arg0: i32, %arg1: memref<128x64xbf16, #tpu.memory_space<vmem>>, %arg2: memref<128x32xbf16, #tpu.memory_space<vmem>>, %arg3: memref<128x64xbf16, #tpu.memory_space<vmem>>, %arg4: memref<32x64xbf16, #tpu.memory_space<vmem>>, %arg5: memref<32x1xf32, #tpu.memory_space<vmem>>, %arg6: memref<32x32xbf16, #tpu.memory_space<vmem>>, %arg7: memref<32x1xf32, #tpu.memory_space<vmem>>, %arg8: memref<1x128xf32, #tpu.memory_space<vmem>>) attributes {dimension_semantics = [#tpu.dimension_semantics<parallel>], iteration_bounds = array<i64: 4>, scalar_prefetch = 0 : i64, scratch_operands = 0 : i64, tpu.core_type = #tpu.core_type<tc>, window_params = [{transform_indices = @transform_0, window_bounds = array<i64: 128, 64>}, {transform_indices = @transform_1, window_bounds = array<i64: 128, 32>}, {transform_indices = @transform_2, window_bounds = array<i64: 128, 64>}, {pipeline_mode = #tpu.pipeline_mode<synchronous>, transform_indices = @transform_3, window_bounds = array<i64: 32, 64>}, {pipeline_mode = #tpu.pipeline_mode<synchronous>, transform_indices = @transform_4, window_bounds = array<i64: 32, 1>}, {pipeline_mode = #tpu.pipeline_mode<synchronous>, transform_indices = @transform_5, window_bounds = array<i64: 32, 32>}, {pipeline_mode = #tpu.pipeline_mode<synchronous>, transform_indices = @transform_6, window_bounds = array<i64: 32, 1>}, {transform_indices = @transform_7, window_bounds = array<i64: 1, 128>}]} {
    %c0 = arith.constant 0 : index
    %c0_0 = arith.constant 0 : index
    %0 = vector.load %arg4[%c0, %c0_0] : memref<32x64xbf16, #tpu.memory_space<vmem>>, vector<32x64xbf16>
    %c0_1 = arith.constant 0 : index
    %c0_2 = arith.constant 0 : index
    %1 = vector.load %arg5[%c0_1, %c0_2] : memref<32x1xf32, #tpu.memory_space<vmem>>, vector<32x1xf32>
    %c0_3 = arith.constant 0 : index
    %c0_4 = arith.constant 0 : index
    %2 = vector.load %arg1[%c0_3, %c0_4] : memref<128x64xbf16, #tpu.memory_space<vmem>>, vector<128x64xbf16>
    %cst = arith.constant dense<0.000000e+00> : vector<32x128xf32>
    %3 = tpu.matmul %0, %2, %cst {dimension_numbers = #tpu.dot_dimension_numbers<[1], [1], [0], [0], [0, 0, 1, 0], [], []>} : vector<32x64xbf16>, vector<128x64xbf16>, vector<32x128xf32> -> vector<32x128xf32>
    %4 = vector.broadcast %1 : vector<32x1xf32> to vector<32x128xf32>
    %5 = arith.addf %3, %4 : vector<32x128xf32>
    %c0_5 = arith.constant 0 : index
    %c0_6 = arith.constant 0 : index
    %6 = vector.load %arg3[%c0_5, %c0_6] : memref<128x64xbf16, #tpu.memory_space<vmem>>, vector<128x64xbf16>
    %cst_7 = arith.constant dense<0.000000e+00> : vector<32x128xf32>
    %7 = tpu.matmul %0, %6, %cst_7 {dimension_numbers = #tpu.dot_dimension_numbers<[1], [1], [0], [0], [0, 0, 1, 0], [], []>} : vector<32x64xbf16>, vector<128x64xbf16>, vector<32x128xf32> -> vector<32x128xf32>
    %8 = vector.broadcast %1 : vector<32x1xf32> to vector<32x128xf32>
    %9 = arith.addf %7, %8 : vector<32x128xf32>
    %c0_8 = arith.constant 0 : index
    %c0_9 = arith.constant 0 : index
    %10 = vector.load %arg6[%c0_8, %c0_9] : memref<32x32xbf16, #tpu.memory_space<vmem>>, vector<32x32xbf16>
    %c0_10 = arith.constant 0 : index
    %c0_11 = arith.constant 0 : index
    %11 = vector.load %arg2[%c0_10, %c0_11] : memref<128x32xbf16, #tpu.memory_space<vmem>>, vector<128x32xbf16>
    %cst_12 = arith.constant dense<0.000000e+00> : vector<32x128xf32>
    %12 = tpu.matmul %10, %11, %cst_12 {dimension_numbers = #tpu.dot_dimension_numbers<[1], [1], [0], [0], [0, 0, 1, 0], [], []>} : vector<32x32xbf16>, vector<128x32xbf16>, vector<32x128xf32> -> vector<32x128xf32>
    %c0_13 = arith.constant 0 : index
    %c0_14 = arith.constant 0 : index
    %13 = vector.load %arg7[%c0_13, %c0_14] : memref<32x1xf32, #tpu.memory_space<vmem>>, vector<32x1xf32>
    %14 = vector.broadcast %13 : vector<32x1xf32> to vector<32x128xf32>
    %15 = arith.addf %12, %14 : vector<32x128xf32>
    %16 = arith.mulf %5, %15 : vector<32x128xf32>
    %17 = arith.mulf %16, %9 : vector<32x128xf32>
    %cst_15 = arith.constant dense<0.000000e+00> : vector<128xf32>
    %18 = vector.multi_reduction <add>, %17, %cst_15 [0] : vector<32x128xf32> to vector<128xf32>
    %19 = vector.shape_cast %18 : vector<128xf32> to vector<1x128xf32>
    %c0_16 = arith.constant 0 : index
    %c0_17 = arith.constant 0 : index
    %20 = vector.load %arg8[%c0_16, %c0_17] : memref<1x128xf32, #tpu.memory_space<vmem>>, vector<1x128xf32>
    tpu.vector_store %arg8[%c0_16, %c0_17], %19 {strides = array<i32>} : memref<1x128xf32, #tpu.memory_space<vmem>>, vector<1x128xf32>,
    return
  }
  func.func @transform_0(%arg0: i32) -> (i32, i32) {
    %c0_i32 = arith.constant 0 : i32
    %c0_i32_0 = arith.constant 0 : i32
    return %arg0, %c0_i32 : i32, i32
  }
  func.func @transform_1(%arg0: i32) -> (i32, i32) {
    %c0_i32 = arith.constant 0 : i32
    %c0_i32_0 = arith.constant 0 : i32
    return %arg0, %c0_i32 : i32, i32
  }
  func.func @transform_2(%arg0: i32) -> (i32, i32) {
    %c0_i32 = arith.constant 0 : i32
    %c0_i32_0 = arith.constant 0 : i32
    return %arg0, %c0_i32 : i32, i32
  }
  func.func @transform_3(%arg0: i32) -> (i32, i32) {
    %c0_i32 = arith.constant 0 : i32
    %c0_i32_0 = arith.constant 0 : i32
    %c0_i32_1 = arith.constant 0 : i32
    return %c0_i32, %c0_i32_0 : i32, i32
  }
  func.func @transform_4(%arg0: i32) -> (i32, i32) {
    %c0_i32 = arith.constant 0 : i32
    %c0_i32_0 = arith.constant 0 : i32
    %c0_i32_1 = arith.constant 0 : i32
    return %c0_i32, %c0_i32_0 : i32, i32
  }
  func.func @transform_5(%arg0: i32) -> (i32, i32) {
    %c0_i32 = arith.constant 0 : i32
    %c0_i32_0 = arith.constant 0 : i32
    %c0_i32_1 = arith.constant 0 : i32
    return %c0_i32, %c0_i32_0 : i32, i32
  }
  func.func @transform_6(%arg0: i32) -> (i32, i32) {
    %c0_i32 = arith.constant 0 : i32
    %c0_i32_0 = arith.constant 0 : i32
    %c0_i32_1 = arith.constant 0 : i32
    return %c0_i32, %c0_i32_0 : i32, i32
  }
  func.func @transform_7(%arg0: i32) -> (i32, i32) {
    %c0_i32 = arith.constant 0 : i32
    %c0_i32_0 = arith.constant 0 : i32
    return %c0_i32, %arg0 : i32, i32
  }
}

</mosaic_0001>

<llo_original>
// kernel: tpu_custom_call.1
$region0: #{tpu_custom_call.1}
  #allocation0 [shape = 'u32[]', space=smem, size = 0x4, offset = 0x4, fixed_abs, tag = 'smem constant byte address 0x4 - core index']
  #allocation1 [shape = 'u32[72,128]{1,0:T(1,128)}', space=vmem, size = 0x9000, scoped, tag = 'internal scratch']
  %s0 = inlined_call_operand.vmem [shape: bf16[512,64], index: 0, kind: input, shape index: {}]
  %s1 = inlined_call_operand.vmem [shape: bf16[512,32], index: 1, kind: input, shape index: {}]
  %s2 = inlined_call_operand.vmem [shape: bf16[512,64], index: 2, kind: input, shape index: {}]
  %s3 = inlined_call_operand.vmem [shape: bf16[32,64], index: 3, kind: input, shape index: {}]
  %s4 = inlined_call_operand.vmem [shape: f32[32,1], index: 4, kind: input, shape index: {}]
  %s5 = inlined_call_operand.vmem [shape: bf16[32,32], index: 5, kind: input, shape index: {}]
  %s6 = inlined_call_operand.vmem [shape: f32[32,1], index: 6, kind: input, shape index: {}]
  %s7 = inlined_call_operand.hbm [shape: f32[1,512], index: 7, kind: output, shape index: {}]
  %s8 = sld [smem:[#allocation0]]
  $region61: #{tpu_custom_call.1} parent=0
    _
  %s10 = ssub.s32 1, %s8
  %s11 = scalar_select 0, %s10, %s8
  $region1: #{tpu_custom_call.1} parent=0
    #allocation2 [shape = 'u8[1024]{0}', space=vmem, size = 0x400, scoped, tag = 'output window, operand 0']
    #allocation3 [shape = 's32[2]{0}', space=sflag, size = 0x8, scoped, tag = 'scoped memory for tpu_custom_call.1']
    %12 = vsyncpa [#allocation3], 0
    %s13 = scalar_lea.sflag [#allocation3], 1
    %14 = vsyncpa %s13, 0
    loop: start=0, step=1, limit=6
    $region2: #{tpu_custom_call.1} parent=1 // loop_pre_header
      _
    $region3: #{tpu_custom_call.1} parent=1 // loop_header
      %s16 = sphi 0, %s20
      %p17 = scmp.ge.s32.totalorder %s16, 6
      %s26 = sphi 0, %s28
      %s29 = sphi 0, %s26
      %s30 = sphi 0, %s29
      %s46 = sphi 0, %s30
      %s52 = sphi 0, %s54
      %s55 = sphi 0, %s52
      %s56 = sphi 0, %s55
      %s72 = sphi 0, %s56
      %s78 = sphi 0, %s80
      %s81 = sphi 0, %s78
      %s82 = sphi 0, %s81
      %s98 = sphi 0, %s82
      %s102 = sphi 0, %s102
      %s104 = sphi 0, %s102
      %s105 = sphi 0, %s104
      %s119 = sphi 0, %s105
      %s123 = sphi 0, %s123
      %s125 = sphi 0, %s123
      %s126 = sphi 0, %s125
      %s140 = sphi 0, %s126
      %s144 = sphi 0, %s144
      %s146 = sphi 0, %s144
      %s147 = sphi 0, %s146
      %s161 = sphi 0, %s147
      %s165 = sphi 0, %s165
      %s167 = sphi 0, %s165
      %s168 = sphi 0, %s167
      %s182 = sphi 0, %s168
      %s188 = sphi 0, %s190
      %s191 = sphi 0, %s188
      %s192 = sphi 0, %s191
      %s208 = sphi 0, %s192
    $region4: #{tpu_custom_call.1} parent=1 // loop_header_branch
      %19 = sbr.rel (%p17) target = $region8
    $region5: #{tpu_custom_call.1} parent=1 // loop_body
      %s21 = ssub.s32 %s16, 1
      %s22 = ssub.s32 %s16, 2
      %s23 = sadd.s32 %s16, 1
      %s24 = ssub.s32 %s16, %s23
      %p25 = scmp.eq.s32.totalorder %s24, 0
      %s27 = sadd.s32 %s26, 1
      %s28 = scalar_select %p25, %s26, %s27
      %p31 = pneg %p25
      %p32 = scmp.eq.s32.totalorder %s16, 3
      %p33 = por %p31, %p32
      %p34 = scmp.ne.s32.totalorder %s26, %s29
      %p35 = scmp.eq.s32.totalorder %s16, 0
      %p36 = por %p34, %p35
      %p37 = scmp.ne.s32.totalorder %s26, %s29
      %p38 = scmp.eq.s32.totalorder %s21, 3
      %p39 = por %p37, %p38
      %p40 = scmp.ne.s32.totalorder %s29, %s30
      %p41 = scmp.eq.s32.totalorder %s21, 0
      %p42 = por %p40, %p41
      %p43 = scmp.ne.s32.totalorder %s29, %s30
      %p44 = scmp.eq.s32.totalorder %s22, 3
      %p45 = por %p43, %p44
      %p47 = scmp.ne.s32.totalorder %s30, %s46
      %p48 = scmp.eq.s32.totalorder %s22, 0
      %p49 = por %p47, %p48
      %s50 = ssub.s32 %s16, %s23
      %p51 = scmp.eq.s32.totalorder %s50, 0
      %s53 = sadd.s32 %s52, 1
      %s54 = scalar_select %p51, %s52, %s53
      %p57 = pneg %p51
      %p58 = scmp.eq.s32.totalorder %s16, 3
      %p59 = por %p57, %p58
      %p60 = scmp.ne.s32.totalorder %s52, %s55
      %p61 = scmp.eq.s32.totalorder %s16, 0
      %p62 = por %p60, %p61
      %p63 = scmp.ne.s32.totalorder %s52, %s55
      %p64 = scmp.eq.s32.totalorder %s21, 3
      %p65 = por %p63, %p64
      %p66 = scmp.ne.s32.totalorder %s55, %s56
      %p67 = scmp.eq.s32.totalorder %s21, 0
      %p68 = por %p66, %p67
      %p69 = scmp.ne.s32.totalorder %s55, %s56
      %p70 = scmp.eq.s32.totalorder %s22, 3
      %p71 = por %p69, %p70
      %p73 = scmp.ne.s32.totalorder %s56, %s72
      %p74 = scmp.eq.s32.totalorder %s22, 0
      %p75 = por %p73, %p74
      %s76 = ssub.s32 %s16, %s23
      %p77 = scmp.eq.s32.totalorder %s76, 0
      %s79 = sadd.s32 %s78, 1
      %s80 = scalar_select %p77, %s78, %s79
      %p83 = pneg %p77
      %p84 = scmp.eq.s32.totalorder %s16, 3
      %p85 = por %p83, %p84
      %p86 = scmp.ne.s32.totalorder %s78, %s81
      %p87 = scmp.eq.s32.totalorder %s16, 0
      %p88 = por %p86, %p87
      %p89 = scmp.ne.s32.totalorder %s78, %s81
      %p90 = scmp.eq.s32.totalorder %s21, 3
      %p91 = por %p89, %p90
      %p92 = scmp.ne.s32.totalorder %s81, %s82
      %p93 = scmp.eq.s32.totalorder %s21, 0
      %p94 = por %p92, %p93
      %p95 = scmp.ne.s32.totalorder %s81, %s82
      %p96 = scmp.eq.s32.totalorder %s22, 3
      %p97 = por %p95, %p96
      %p99 = scmp.ne.s32.totalorder %s82, %s98
      %p100 = scmp.eq.s32.totalorder %s22, 0
      %p101 = por %p99, %p100
      %s103 = sadd.s32 %s102, 1
      %p106 = scmp.eq.s32.totalorder %s16, 3
      %p107 = scmp.ne.s32.totalorder %s102, %s104
      %p108 = scmp.eq.s32.totalorder %s16, 0
      %p109 = por %p107, %p108
      %p110 = scmp.ne.s32.totalorder %s102, %s104
      %p111 = scmp.eq.s32.totalorder %s21, 3
      %p112 = por %p110, %p111
      %p113 = scmp.ne.s32.totalorder %s104, %s105
      %p114 = scmp.eq.s32.totalorder %s21, 0
      %p115 = por %p113, %p114
      %p116 = scmp.ne.s32.totalorder %s104, %s105
      %p117 = scmp.eq.s32.totalorder %s22, 3
      %p118 = por %p116, %p117
      %p120 = scmp.ne.s32.totalorder %s105, %s119
      %p121 = scmp.eq.s32.totalorder %s22, 0
      %p122 = por %p120, %p121
      %s124 = sadd.s32 %s123, 1
      %p127 = scmp.eq.s32.totalorder %s16, 3
      %p128 = scmp.ne.s32.totalorder %s123, %s125
      %p129 = scmp.eq.s32.totalorder %s16, 0
      %p130 = por %p128, %p129
      %p131 = scmp.ne.s32.totalorder %s123, %s125
      %p132 = scmp.eq.s32.totalorder %s21, 3
      %p133 = por %p131, %p132
      %p134 = scmp.ne.s32.totalorder %s125, %s126
      %p135 = scmp.eq.s32.totalorder %s21, 0
      %p136 = por %p134, %p135
      %p137 = scmp.ne.s32.totalorder %s125, %s126
      %p138 = scmp.eq.s32.totalorder %s22, 3
      %p139 = por %p137, %p138
      %p141 = scmp.ne.s32.totalorder %s126, %s140
      %p142 = scmp.eq.s32.totalorder %s22, 0
      %p143 = por %p141, %p142
      %s145 = sadd.s32 %s144, 1
      %p148 = scmp.eq.s32.totalorder %s16, 3
      %p149 = scmp.ne.s32.totalorder %s144, %s146
      %p150 = scmp.eq.s32.totalorder %s16, 0
      %p151 = por %p149, %p150
      %p152 = scmp.ne.s32.totalorder %s144, %s146
      %p153 = scmp.eq.s32.totalorder %s21, 3
      %p154 = por %p152, %p153
      %p155 = scmp.ne.s32.totalorder %s146, %s147
      %p156 = scmp.eq.s32.totalorder %s21, 0
      %p157 = por %p155, %p156
      %p158 = scmp.ne.s32.totalorder %s146, %s147
      %p159 = scmp.eq.s32.totalorder %s22, 3
      %p160 = por %p158, %p159
      %p162 = scmp.ne.s32.totalorder %s147, %s161
      %p163 = scmp.eq.s32.totalorder %s22, 0
      %p164 = por %p162, %p163
      %s166 = sadd.s32 %s165, 1
      %p169 = scmp.eq.s32.totalorder %s16, 3
      %p170 = scmp.ne.s32.totalorder %s165, %s167
      %p171 = scmp.eq.s32.totalorder %s16, 0
      %p172 = por %p170, %p171
      %p173 = scmp.ne.s32.totalorder %s165, %s167
      %p174 = scmp.eq.s32.totalorder %s21, 3
      %p175 = por %p173, %p174
      %p176 = scmp.ne.s32.totalorder %s167, %s168
      %p177 = scmp.eq.s32.totalorder %s21, 0
      %p178 = por %p176, %p177
      %p179 = scmp.ne.s32.totalorder %s167, %s168
      %p180 = scmp.eq.s32.totalorder %s22, 3
      %p181 = por %p179, %p180
      %p183 = scmp.ne.s32.totalorder %s168, %s182
      %p184 = scmp.eq.s32.totalorder %s22, 0
      %p185 = por %p183, %p184
      %s186 = ssub.s32 %s16, %s23
      %p187 = scmp.eq.s32.totalorder %s186, 0
      %s189 = sadd.s32 %s188, 1
      %s190 = scalar_select %p187, %s188, %s189
      %p193 = pneg %p187
      %p194 = scmp.eq.s32.totalorder %s16, 3
      %p195 = por %p193, %p194
      %p196 = scmp.ne.s32.totalorder %s188, %s191
      %p197 = scmp.eq.s32.totalorder %s16, 0
      %p198 = por %p196, %p197
      %p199 = scmp.ne.s32.totalorder %s188, %s191
      %p200 = scmp.eq.s32.totalorder %s21, 3
      %p201 = por %p199, %p200
      %p202 = scmp.ne.s32.totalorder %s191, %s192
      %p203 = scmp.eq.s32.totalorder %s21, 0
      %p204 = por %p202, %p203
      %p205 = scmp.ne.s32.totalorder %s191, %s192
      %p206 = scmp.eq.s32.totalorder %s22, 3
      %p207 = por %p205, %p206
      %p209 = scmp.ne.s32.totalorder %s192, %s208
      %p210 = scmp.eq.s32.totalorder %s22, 0
      %p211 = por %p209, %p210
      %p212 = scmp.le.s32.totalorder 1, %s16
      %p213 = scmp.lt.s32.totalorder %s16, 5
      %p214 = pnand %p212, %p213
      %p215 = pneg %p214
      // Predicated region
      $region9: #{tpu_custom_call.1} parent=5 // pred_check
        _
      $region10: #{tpu_custom_call.1} parent=5 // pred_check_branch
        %217 = sbr.rel (%p214) target = $region12
      $region11: #{tpu_custom_call.1} parent=5 // pred_region
        %s218 = ssub.s32 %s16, 1
        // Predicated region
        $region13: #{tpu_custom_call.1} parent=11 // pred_check
          %p219 = pneg %p115
        $region14: #{tpu_custom_call.1} parent=11 // pred_check_branch
          %221 = sbr.rel (%p219) target = $region16
        $region15: #{tpu_custom_call.1} parent=11 // pred_region
          _
        $region16: #{tpu_custom_call.1} parent=11 // pred_fallthru
          _
        // Predicated region
        $region17: #{tpu_custom_call.1} parent=11 // pred_check
          %p222 = pneg %p136
        $region18: #{tpu_custom_call.1} parent=11 // pred_check_branch
          %224 = sbr.rel (%p222) target = $region20
        $region19: #{tpu_custom_call.1} parent=11 // pred_region
          _
        $region20: #{tpu_custom_call.1} parent=11 // pred_fallthru
          _
        // Predicated region
        $region21: #{tpu_custom_call.1} parent=11 // pred_check
          %p225 = pneg %p157
        $region22: #{tpu_custom_call.1} parent=11 // pred_check_branch
          %227 = sbr.rel (%p225) target = $region24
        $region23: #{tpu_custom_call.1} parent=11 // pred_region
          _
        $region24: #{tpu_custom_call.1} parent=11 // pred_fallthru
          _
        // Predicated region
        $region25: #{tpu_custom_call.1} parent=11 // pred_check
          %p228 = pneg %p178
        $region26: #{tpu_custom_call.1} parent=11 // pred_check_branch
          %230 = sbr.rel (%p228) target = $region28
        $region27: #{tpu_custom_call.1} parent=11 // pred_region
          _
        $region28: #{tpu_custom_call.1} parent=11 // pred_fallthru
          _
      $region12: #{tpu_custom_call.1} parent=5 // pred_fallthru
        _
      %p231 = scmp.lt.s32.totalorder %s16, 4
      // Predicated region
      $region29: #{tpu_custom_call.1} parent=5 // pred_check
        %p232 = pneg %p231
      $region30: #{tpu_custom_call.1} parent=5 // pred_check_branch
        %234 = sbr.rel (%p232) target = $region32
      $region31: #{tpu_custom_call.1} parent=5 // pred_region
        // Predicated region
        $region33: #{tpu_custom_call.1} parent=31 // pred_check
          %p235 = pneg %p36
        $region34: #{tpu_custom_call.1} parent=31 // pred_check_branch
          %237 = sbr.rel (%p235) target = $region36
        $region35: #{tpu_custom_call.1} parent=31 // pred_region
          %s238 = smul.u32 16, %s16
          %p239 = scmp.lt.s32.totalorder %s238, 63
          %s240 = scalar_select %p239, %s238, 63
          %s241 = smul.addr %s240, 4
          %s242 = scalar_lea.vmem %s0, %s241
          %s243 = smul.u32 16, %s16
        $region36: #{tpu_custom_call.1} parent=31 // pred_fallthru
          _
        // Predicated region
        $region37: #{tpu_custom_call.1} parent=31 // pred_check
          %p244 = pneg %p62
        $region38: #{tpu_custom_call.1} parent=31 // pred_check_branch
          %246 = sbr.rel (%p244) target = $region40
        $region39: #{tpu_custom_call.1} parent=31 // pred_region
          %s247 = smul.u32 16, %s16
          %p248 = scmp.lt.s32.totalorder %s247, 63
          %s249 = scalar_select %p248, %s247, 63
          %s250 = smul.addr %s249, 4
          %s251 = scalar_lea.vmem %s1, %s250
          %s252 = smul.u32 16, %s16
        $region40: #{tpu_custom_call.1} parent=31 // pred_fallthru
          _
        // Predicated region
        $region41: #{tpu_custom_call.1} parent=31 // pred_check
          %p253 = pneg %p88
        $region42: #{tpu_custom_call.1} parent=31 // pred_check_branch
          %255 = sbr.rel (%p253) target = $region44
        $region43: #{tpu_custom_call.1} parent=31 // pred_region
          %s256 = smul.u32 16, %s16
          %p257 = scmp.lt.s32.totalorder %s256, 63
          %s258 = scalar_select %p257, %s256, 63
          %s259 = smul.addr %s258, 4
          %s260 = scalar_lea.vmem %s2, %s259
          %s261 = smul.u32 16, %s16
        $region44: #{tpu_custom_call.1} parent=31 // pred_fallthru
          _
      $region32: #{tpu_custom_call.1} parent=5 // pred_fallthru
        _
      %p262 = scmp.le.s32.totalorder 1, %s16
      %p263 = scmp.lt.s32.totalorder %s16, 5
      %p264 = pnand %p262, %p263
      %p265 = pneg %p264
      // Predicated region
      $region45: #{tpu_custom_call.1} parent=5 // pred_check
        _
      $region46: #{tpu_custom_call.1} parent=5 // pred_check_branch
        %267 = sbr.rel (%p264) target = $region48
      $region47: #{tpu_custom_call.1} parent=5 // pred_region
        %s268 = ssub.s32 %s16, 1
        %s269 = smul.u32 16, %s21
        %p270 = scmp.lt.s32.totalorder %s269, 63
        %s271 = scalar_select %p270, %s269, 63
        %s272 = smul.addr %s271, 4
        %s273 = scalar_lea.vmem %s0, %s272
        %p274 = pneg %p42
        %p275 = pneg %p39
        %s276 = smul.u32 16, %s21
        %p277 = scmp.lt.s32.totalorder %s276, 63
        %s278 = scalar_select %p277, %s276, 63
        %s279 = smul.addr %s278, 4
        %s280 = scalar_lea.vmem %s1, %s279
        %p281 = pneg %p68
        %p282 = pneg %p65
        %s283 = smul.u32 16, %s21
        %p284 = scmp.lt.s32.totalorder %s283, 63
        %s285 = scalar_select %p284, %s283, 63
        %s286 = smul.addr %s285, 4
        %s287 = scalar_lea.vmem %s2, %s286
        %p288 = pneg %p94
        %p289 = pneg %p91
        %p290 = pneg %p115
        %p291 = pneg %p112
        %p292 = pneg %p136
        %p293 = pneg %p133
        %p294 = pneg %p157
        %p295 = pneg %p154
        %p296 = pneg %p178
        %p297 = pneg %p175
        %p298 = pneg %p204
        %p299 = pneg %p201
        %s300 = sand.u32 %s191, 1
        %s301 = scalar_lea.sflag [#allocation3], %s300
        %s302 = sand.u32 %s191, 1
        %s303 = scalar_lea.vmem [#allocation2], %s302
        %s304 = smul.u32 16, %s21
        %p305 = scmp.lt.s32.totalorder %s304, 63
        %s306 = scalar_select %p305, %s304, 63
        %s307 = smul.addr %s306, 4
        %s308 = scalar_lea.vmem %s0, %s307
        %s309 = smul.u32 16, %s21
        %s310 = smul.u32 16, %s21
        %p311 = scmp.lt.s32.totalorder %s310, 63
        %s312 = scalar_select %p311, %s310, 63
        %s313 = smul.addr %s312, 4
        %s314 = scalar_lea.vmem %s1, %s313
        %s315 = smul.u32 16, %s21
        %s316 = smul.u32 16, %s21
        %p317 = scmp.lt.s32.totalorder %s316, 63
        %s318 = scalar_select %p317, %s316, 63
        %s319 = smul.addr %s318, 4
        %s320 = scalar_lea.vmem %s2, %s319
        %s321 = smul.u32 16, %s21
        %v322 = vld [vmem:[%s3] sm:$0xf]
        %v323 = vld [vmem:[%s3 + $0x4] sm:$0xf]
        %v324 = vld [vmem:[%s3 + $0x8] sm:$0xf]
        %v325 = vld [vmem:[%s3 + $0xc] sm:$0xf]
        %v326 = vld [vmem:[%s4] sm:$0xff]
        %v327 = vld [vmem:[%s4 + $0x8] sm:$0xff]
        %v328 = vld [vmem:[%s4 + $0x10] sm:$0xff]
        %v329 = vld [vmem:[%s4 + $0x18] sm:$0xff]
        %v330 = vld [vmem:[%s308] sm:$0xf]
        %v331 = vld [vmem:[%s308 + $0x4] sm:$0xf]
        %v332 = vld [vmem:[%s308 + $0x8] sm:$0xf]
        %v333 = vld [vmem:[%s308 + $0xc] sm:$0xf]
        %v334 = vld [vmem:[%s308 + $0x10] sm:$0xf]
        %v335 = vld [vmem:[%s308 + $0x14] sm:$0xf]
        %v336 = vld [vmem:[%s308 + $0x18] sm:$0xf]
        %v337 = vld [vmem:[%s308 + $0x1c] sm:$0xf]
        %v338 = vld [vmem:[%s308 + $0x20] sm:$0xf]
        %v339 = vld [vmem:[%s308 + $0x24] sm:$0xf]
        %v340 = vld [vmem:[%s308 + $0x28] sm:$0xf]
        %v341 = vld [vmem:[%s308 + $0x2c] sm:$0xf]
        %v342 = vld [vmem:[%s308 + $0x30] sm:$0xf]
        %v343 = vld [vmem:[%s308 + $0x34] sm:$0xf]
        %v344 = vld [vmem:[%s308 + $0x38] sm:$0xf]
        %v345 = vld [vmem:[%s308 + $0x3c] sm:$0xf]
        %347 = vset.pattern.permute.xlu0 0
        %348 = vperm.xlu0 %347, %v326
        %v349 = vpop.permute.xlu0 %348
        %352 = vset.pattern.permute.xlu0 0
        %353 = vperm.xlu0 %352, %v327
        %v354 = vpop.permute.xlu0 %353
        %357 = vset.pattern.permute.xlu0 0
        %358 = vperm.xlu0 %357, %v328
        %v359 = vpop.permute.xlu0 %358
        %362 = vset.pattern.permute.xlu0 0
        %363 = vperm.xlu0 %362, %v329
        %v364 = vpop.permute.xlu0 %363
        %v370 = vunpack.c.l.b16 %v322
        %v371 = vunpack.c.l.b16 %v323
        %v372 = vunpack.c.l.b16 %v324
        %v373 = vunpack.c.l.b16 %v325
        %v374 = vpack.c.b16 %v371, %v370
        %v375 = vpack.c.b16 %v373, %v372
        %v392 = vunpack.c.l.b16 %v330
        %v393 = vunpack.c.l.b16 %v331
        %v394 = vunpack.c.l.b16 %v332
        %v395 = vunpack.c.l.b16 %v333
        %v396 = vunpack.c.l.b16 %v334
        %v397 = vunpack.c.l.b16 %v335
        %v398 = vunpack.c.l.b16 %v336
        %v399 = vunpack.c.l.b16 %v337
        %v400 = vunpack.c.l.b16 %v338
        %v401 = vunpack.c.l.b16 %v339
        %v402 = vunpack.c.l.b16 %v340
        %v403 = vunpack.c.l.b16 %v341
        %v404 = vunpack.c.l.b16 %v342
        %v405 = vunpack.c.l.b16 %v343
        %v406 = vunpack.c.l.b16 %v344
        %v407 = vunpack.c.l.b16 %v345
        %v408 = vpack.c.b16 %v393, %v392
        %v409 = vpack.c.b16 %v395, %v394
        %v410 = vpack.c.b16 %v397, %v396
        %v411 = vpack.c.b16 %v399, %v398
        %v412 = vpack.c.b16 %v401, %v400
        %v413 = vpack.c.b16 %v403, %v402
        %v414 = vpack.c.b16 %v405, %v404
        %v415 = vpack.c.b16 %v407, %v406
        %vm416 = vcmask 523264
        %v418 = vsel %vm416, %v374, 0
        %v421 = vsel %vm416, %v375, 0
        %v424 = vsel %vm416, %v408, 0
        %v427 = vsel %vm416, %v409, 0
        %v430 = vsel %vm416, %v410, 0
        %v433 = vsel %vm416, %v411, 0
        %v436 = vsel %vm416, %v412, 0
        %v439 = vsel %vm416, %v413, 0
        %v442 = vsel %vm416, %v414, 0
        %v445 = vsel %vm416, %v415, 0
        %447 = vmatpush.bf16.xpose.msra.mxu0 %v445
        %448 = vmatpush.bf16.xpose.msra.mxu0 %v442
        %449 = vmatpush.bf16.xpose.msra.mxu0 %v439
        %450 = vmatpush.bf16.xpose.msra.mxu0 %v436
        %451 = vmatpush.bf16.xpose.msra.mxu0 %v433
        %452 = vmatpush.bf16.xpose.msra.mxu0 %v430
        %453 = vmatpush.bf16.xpose.msra.mxu0 %v427
        %454 = vmatpush.bf16.xpose.msra.mxu0 %v424
        %455 = vmatmul.bf16.gmra.mxu0 %v418
        %v456 = vpop.f32.mrf.mxu0
        %v457 = vadd.f32 %v349, %v456
        %v458 = vpop.f32.mrf.mxu0
        %v459 = vadd.f32 %v354, %v458
        %460 = vmatmul.bf16.gmra.mxu0 %v421
        %v461 = vpop.f32.mrf.mxu0
        %v462 = vadd.f32 %v359, %v461
        %v463 = vpop.f32.mrf.mxu0
        %v464 = vadd.f32 %v364, %v463
        %465 = vdwg.mxu0
        %v466 = vld [vmem:[%s320] sm:$0xf]
        %v467 = vld [vmem:[%s320 + $0x4] sm:$0xf]
        %v468 = vld [vmem:[%s320 + $0x8] sm:$0xf]
        %v469 = vld [vmem:[%s320 + $0xc] sm:$0xf]
        %v470 = vld [vmem:[%s320 + $0x10] sm:$0xf]
        %v471 = vld [vmem:[%s320 + $0x14] sm:$0xf]
        %v472 = vld [vmem:[%s320 + $0x18] sm:$0xf]
        %v473 = vld [vmem:[%s320 + $0x1c] sm:$0xf]
        %v474 = vld [vmem:[%s320 + $0x20] sm:$0xf]
        %v475 = vld [vmem:[%s320 + $0x24] sm:$0xf]
        %v476 = vld [vmem:[%s320 + $0x28] sm:$0xf]
        %v477 = vld [vmem:[%s320 + $0x2c] sm:$0xf]
        %v478 = vld [vmem:[%s320 + $0x30] sm:$0xf]
        %v479 = vld [vmem:[%s320 + $0x34] sm:$0xf]
        %v480 = vld [vmem:[%s320 + $0x38] sm:$0xf]
        %v481 = vld [vmem:[%s320 + $0x3c] sm:$0xf]
        %v498 = vunpack.c.l.b16 %v466
        %v499 = vunpack.c.l.b16 %v467
        %v500 = vunpack.c.l.b16 %v468
        %v501 = vunpack.c.l.b16 %v469
        %v502 = vunpack.c.l.b16 %v470
        %v503 = vunpack.c.l.b16 %v471
        %v504 = vunpack.c.l.b16 %v472
        %v505 = vunpack.c.l.b16 %v473
        %v506 = vunpack.c.l.b16 %v474
        %v507 = vunpack.c.l.b16 %v475
        %v508 = vunpack.c.l.b16 %v476
        %v509 = vunpack.c.l.b16 %v477
        %v510 = vunpack.c.l.b16 %v478
        %v511 = vunpack.c.l.b16 %v479
        %v512 = vunpack.c.l.b16 %v480
        %v513 = vunpack.c.l.b16 %v481
        %v514 = vpack.c.b16 %v499, %v498
        %v515 = vpack.c.b16 %v501, %v500
        %v516 = vpack.c.b16 %v503, %v502
        %v517 = vpack.c.b16 %v505, %v504
        %v518 = vpack.c.b16 %v507, %v506
        %v519 = vpack.c.b16 %v509, %v508
        %v520 = vpack.c.b16 %v511, %v510
        %v521 = vpack.c.b16 %v513, %v512
        %v523 = vsel %vm416, %v514, 0
        %v526 = vsel %vm416, %v515, 0
        %v529 = vsel %vm416, %v516, 0
        %v532 = vsel %vm416, %v517, 0
        %v535 = vsel %vm416, %v518, 0
        %v538 = vsel %vm416, %v519, 0
        %v541 = vsel %vm416, %v520, 0
        %v544 = vsel %vm416, %v521, 0
        %546 = vmatpush.bf16.xpose.msra.mxu0 %v544
        %547 = vmatpush.bf16.xpose.msra.mxu0 %v541
        %548 = vmatpush.bf16.xpose.msra.mxu0 %v538
        %549 = vmatpush.bf16.xpose.msra.mxu0 %v535
        %550 = vmatpush.bf16.xpose.msra.mxu0 %v532
        %551 = vmatpush.bf16.xpose.msra.mxu0 %v529
        %552 = vmatpush.bf16.xpose.msra.mxu0 %v526
        %553 = vmatpush.bf16.xpose.msra.mxu0 %v523
        %554 = vmatmul.bf16.gmra.mxu0 %v418
        %v555 = vpop.f32.mrf.mxu0
        %v556 = vadd.f32 %v349, %v555
        %v557 = vpop.f32.mrf.mxu0
        %v558 = vadd.f32 %v354, %v557
        %559 = vmatmul.bf16.gmra.mxu0 %v421
        %v560 = vpop.f32.mrf.mxu0
        %v561 = vadd.f32 %v359, %v560
        %v562 = vpop.f32.mrf.mxu0
        %v563 = vadd.f32 %v364, %v562
        %564 = vdwg.mxu0
        %v565 = vld [vmem:[%s5] sm:$0xf]
        %v566 = vld [vmem:[%s5 + $0x4] sm:$0xf]
        %v567 = vld [vmem:[%s5 + $0x8] sm:$0xf]
        %v568 = vld [vmem:[%s5 + $0xc] sm:$0xf]
        %v569 = vld [vmem:[%s314] sm:$0xf]
        %v570 = vld [vmem:[%s314 + $0x4] sm:$0xf]
        %v571 = vld [vmem:[%s314 + $0x8] sm:$0xf]
        %v572 = vld [vmem:[%s314 + $0xc] sm:$0xf]
        %v573 = vld [vmem:[%s314 + $0x10] sm:$0xf]
        %v574 = vld [vmem:[%s314 + $0x14] sm:$0xf]
        %v575 = vld [vmem:[%s314 + $0x18] sm:$0xf]
        %v576 = vld [vmem:[%s314 + $0x1c] sm:$0xf]
        %v577 = vld [vmem:[%s314 + $0x20] sm:$0xf]
        %v578 = vld [vmem:[%s314 + $0x24] sm:$0xf]
        %v579 = vld [vmem:[%s314 + $0x28] sm:$0xf]
        %v580 = vld [vmem:[%s314 + $0x2c] sm:$0xf]
        %v581 = vld [vmem:[%s314 + $0x30] sm:$0xf]
        %v582 = vld [vmem:[%s314 + $0x34] sm:$0xf]
        %v583 = vld [vmem:[%s314 + $0x38] sm:$0xf]
        %v584 = vld [vmem:[%s314 + $0x3c] sm:$0xf]
        %v585 = vld [vmem:[%s6] sm:$0xff]
        %v586 = vld [vmem:[%s6 + $0x8] sm:$0xff]
        %v587 = vld [vmem:[%s6 + $0x10] sm:$0xff]
        %v588 = vld [vmem:[%s6 + $0x18] sm:$0xff]
        %590 = vset.pattern.permute.xlu0 0
        %591 = vperm.xlu0 %590, %v585
        %v592 = vpop.permute.xlu0 %591
        %595 = vset.pattern.permute.xlu0 0
        %596 = vperm.xlu0 %595, %v586
        %v597 = vpop.permute.xlu0 %596
        %600 = vset.pattern.permute.xlu0 0
        %601 = vperm.xlu0 %600, %v587
        %v602 = vpop.permute.xlu0 %601
        %605 = vset.pattern.permute.xlu0 0
        %606 = vperm.xlu0 %605, %v588
        %v607 = vpop.permute.xlu0 %606
        %v613 = vunpack.c.l.b16 %v565
        %v614 = vunpack.c.l.b16 %v566
        %v615 = vunpack.c.l.b16 %v567
        %v616 = vunpack.c.l.b16 %v568
        %v617 = vpack.c.b16 %v614, %v613
        %v618 = vpack.c.b16 %v616, %v615
        %v635 = vunpack.c.l.b16 %v569
        %v636 = vunpack.c.l.b16 %v570
        %v637 = vunpack.c.l.b16 %v571
        %v638 = vunpack.c.l.b16 %v572
        %v639 = vunpack.c.l.b16 %v573
        %v640 = vunpack.c.l.b16 %v574
        %v641 = vunpack.c.l.b16 %v575
        %v642 = vunpack.c.l.b16 %v576
        %v643 = vunpack.c.l.b16 %v577
        %v644 = vunpack.c.l.b16 %v578
        %v645 = vunpack.c.l.b16 %v579
        %v646 = vunpack.c.l.b16 %v580
        %v647 = vunpack.c.l.b16 %v581
        %v648 = vunpack.c.l.b16 %v582
        %v649 = vunpack.c.l.b16 %v583
        %v650 = vunpack.c.l.b16 %v584
        %v651 = vpack.c.b16 %v636, %v635
        %v652 = vpack.c.b16 %v638, %v637
        %v653 = vpack.c.b16 %v640, %v639
        %v654 = vpack.c.b16 %v642, %v641
        %v655 = vpack.c.b16 %v644, %v643
        %v656 = vpack.c.b16 %v646, %v645
        %v657 = vpack.c.b16 %v648, %v647
        %v658 = vpack.c.b16 %v650, %v649
        %vm659 = vcmask 261120
        %v661 = vsel %vm659, %v617, 0
        %v664 = vsel %vm659, %v618, 0
        %v667 = vsel %vm659, %v651, 0
        %v670 = vsel %vm659, %v652, 0
        %v673 = vsel %vm659, %v653, 0
        %v676 = vsel %vm659, %v654, 0
        %v679 = vsel %vm659, %v655, 0
        %v682 = vsel %vm659, %v656, 0
        %v685 = vsel %vm659, %v657, 0
        %v688 = vsel %vm659, %v658, 0
        %690 = vmatpush.bf16.xpose.msra.mxu0 %v688
        %691 = vmatpush.bf16.xpose.msra.mxu0 %v685
        %692 = vmatpush.bf16.xpose.msra.mxu0 %v682
        %693 = vmatpush.bf16.xpose.msra.mxu0 %v679
        %694 = vmatpush.bf16.xpose.msra.mxu0 %v676
        %695 = vmatpush.bf16.xpose.msra.mxu0 %v673
        %696 = vmatpush.bf16.xpose.msra.mxu0 %v670
        %697 = vmatpush.bf16.xpose.msra.mxu0 %v667
        %698 = vmatmul.bf16.gmra.mxu0 %v661
        %v699 = vpop.f32.mrf.mxu0
        %v700 = vadd.f32 %v592, %v699
        %v701 = vpop.f32.mrf.mxu0
        %v702 = vadd.f32 %v597, %v701
        %703 = vmatmul.bf16.gmra.mxu0 %v664
        %v704 = vpop.f32.mrf.mxu0
        %v705 = vadd.f32 %v602, %v704
        %v706 = vpop.f32.mrf.mxu0
        %v707 = vadd.f32 %v607, %v706
        %708 = vdwg.mxu0
        %v709 = vmul.f32 %v457, %v700
        %v710 = vmul.f32 %v459, %v702
        %v711 = vmul.f32 %v462, %v705
        %v712 = vmul.f32 %v464, %v707
        %v713 = vmul.f32 %v709, %v556
        %v714 = vmul.f32 %v710, %v558
        %v715 = vmul.f32 %v711, %v561
        %v716 = vmul.f32 %v712, %v563
        %v717 = vadd.f32 %v713, %v714
        %v718 = vadd.f32 %v717, %v715
        %v719 = vadd.f32 %v718, %v716
        %v720 = vrot.slane %v719, 4
        %v721 = vadd.f32 %v719, %v720
        %v722 = vrot.slane %v721, 2
        %v723 = vadd.f32 %v721, %v722
        %v724 = vrot.slane %v723, 1
        %v725 = vadd.f32 %v723, %v724
        %726 = vst [vmem:[%s303] sm:$0x1] %v725
        %s727 = sand.u32 %s191, 1
        %s728 = scalar_lea.sflag [#allocation3], %s727
        %s729 = sand.u32 %s191, 1
        %s730 = scalar_lea.vmem [#allocation2], %s729
        // Predicated region
        $region49: #{tpu_custom_call.1} parent=47 // pred_check
          %p731 = pneg %p201
        $region50: #{tpu_custom_call.1} parent=47 // pred_check_branch
          %733 = sbr.rel (%p731) target = $region52
        $region51: #{tpu_custom_call.1} parent=47 // pred_region
          %735 = vsyncadd %s728, 0
          %s736 = scalar_lea.hbm %s7, %s21
          %s738 = sshll.u32 %s730, 4
          %s739 = int_to_ptr.vmem [resolvable:$true] %s738
          %s740 = sshll.u32 %s736, 4
          %s741 = int_to_ptr.hbm [resolvable:$true] %s740
          %743 = dma.vmem_to_hbm [thread:$0]  %s739, 16, %s741, %s728
        $region52: #{tpu_custom_call.1} parent=47 // pred_fallthru
          _
      $region48: #{tpu_custom_call.1} parent=5 // pred_fallthru
        _
      %p744 = scmp.le.s32.totalorder 2, %s16
      // Predicated region
      $region53: #{tpu_custom_call.1} parent=5 // pred_check
        %p745 = pneg %p744
      $region54: #{tpu_custom_call.1} parent=5 // pred_check_branch
        %747 = sbr.rel (%p745) target = $region56
      $region55: #{tpu_custom_call.1} parent=5 // pred_region
        %s748 = ssub.s32 %s16, 2
        // Predicated region
        $region57: #{tpu_custom_call.1} parent=55 // pred_check
          %p749 = pneg %p207
        $region58: #{tpu_custom_call.1} parent=55 // pred_check_branch
          %751 = sbr.rel (%p749) target = $region60
        $region59: #{tpu_custom_call.1} parent=55 // pred_region
          %s752 = sand.u32 %s192, 1
          %s753 = scalar_lea.sflag [#allocation3], %s752
          %s754 = sand.u32 %s192, 1
          %s755 = scalar_lea.vmem [#allocation2], %s754
          %757 = dma.done %s753, 16
        $region60: #{tpu_custom_call.1} parent=55 // pred_fallthru
          _
      $region56: #{tpu_custom_call.1} parent=5 // pred_fallthru
        _
    $region6: #{tpu_custom_call.1} parent=1 // loop_footer
      %s20 = sadd.s32 1, %s16
    $region7: #{tpu_custom_call.1} parent=1 // loop_footer_branch
      %15 = sbr.rel target = $region3
    $region8: #{tpu_custom_call.1} parent=1 // loop_exit
      _
    %758 = vsyncpa [#allocation3], 1
    %s759 = scalar_lea.sflag [#allocation3], 1
    %760 = vsyncpa %s759, 1

</llo_original>
